<compile_context>
chip_gen: v6e
topology: v6e:2x2x1
jax: 0.10.0
libtpu: 0.0.40
codegen_flags: <defaults>
</compile_context>

<pallas_src>
import functools

import jax
import jax.numpy as jnp
from jax.experimental import pallas as pl
from jax.experimental.pallas import tpu as pltpu


def _round_up(a, b):
    return -(-a // b) * b


def _default_bf16_elementwise():
    # bf16 bias-add/ReLU helps on v6e/v7x (bf16 VALU); v5e and older have no
    # bf16 VPU, so keep their elementwise chain in f32.
    try:
        kind = jax.devices()[0].device_kind.lower()
        return not any(v in kind for v in ("v2", "v3", "v4", "v5"))
    except Exception:
        return True


_BF16_ELEMENTWISE = _default_bf16_elementwise()


def _rgb_mlp_kernel(x_ref, w1_ref, b1_ref, w2_ref, b2_ref, w3_ref, b3_ref,
                    o_ref, *, out_dim, bf16_elementwise):
    # Fused fc1 -> ReLU -> fc2 -> ReLU -> fc3, all VMEM-resident.
    # Matmuls hit the MXU in bf16 with f32 accumulation.
    x = x_ref[...].astype(jnp.bfloat16)                       # in-kernel cast (VPU)
    h1 = jnp.dot(x, w1_ref[...], preferred_element_type=jnp.float32)
    if bf16_elementwise:                                      # v6e/v7x: bf16 VALU
        h1 = jnp.maximum(h1.astype(jnp.bfloat16) + b1_ref[...], 0)
    else:                                                     # v5e: f32 VALU only
        h1 = jnp.maximum(h1 + b1_ref[...], 0).astype(jnp.bfloat16)
    h2 = jnp.dot(h1, w2_ref[...], preferred_element_type=jnp.float32)
    if bf16_elementwise:
        h2 = jnp.maximum(h2.astype(jnp.bfloat16) + b2_ref[...], 0)
    else:
        h2 = jnp.maximum(h2 + b2_ref[...], 0).astype(jnp.bfloat16)
    # fc3 operand is lane-padded to 128 for a clean MXU op; only the first
    # out_dim lanes are real, store just those (masked vst, store slot has slack).
    out = jnp.dot(h2, w3_ref[...], preferred_element_type=jnp.float32) + b3_ref[...]
    o_ref[...] = out[:, :out_dim].astype(o_ref.dtype)


def prepare_params(params, bf16_elementwise=_BF16_ELEMENTWISE):
    """One-time conversion of (W[in,out], b) params for the kernel.

    Call once and reuse the result across forward calls; doing the bf16 casts /
    lane-padding here avoids re-executing them on every invocation.
    """
    w1, b1, w2, b2, w3, b3 = params
    hid = w1.shape[1]
    out_dim = w3.shape[1]
    out_lanes = _round_up(out_dim, 128)          # lane-dense fc3 MXU operand
    bias_dtype = jnp.bfloat16 if bf16_elementwise else jnp.float32
    w1b = jnp.asarray(w1, jnp.bfloat16)
    w2b = jnp.asarray(w2, jnp.bfloat16)
    w3b = jnp.pad(jnp.asarray(w3, jnp.float32),
                  ((0, 0), (0, out_lanes - out_dim))).astype(jnp.bfloat16)
    b1r = jnp.asarray(b1, bias_dtype).reshape(1, hid)
    b2r = jnp.asarray(b2, bias_dtype).reshape(1, hid)
    b3r = jnp.pad(jnp.asarray(b3, jnp.float32),
                  (0, out_lanes - out_dim)).reshape(1, out_lanes)
    return (w1b, b1r, w2b, b2r, w3b, b3r)


@functools.partial(jax.jit, static_argnames=("out_dim", "tile_n", "bf16_elementwise"))
def rgb_mlp(x, prepared_params, out_dim=3, tile_n=1024,
            bf16_elementwise=_BF16_ELEMENTWISE):
    """x: [..., input_dim]. prepared_params: output of prepare_params().
    Returns [..., out_dim] matching nn.Linear semantics."""
    w1, b1, w2, b2, w3, b3 = prepared_params
    in_dim, hid = w1.shape
    out_lanes = w3.shape[1]

    lead_shape = x.shape[:-1]
    x2d = x.reshape(-1, in_dim).astype(jnp.float32)
    n = x2d.shape[0]

    # Row tile: 256-aligned big tile when there is enough work (fills the MXU
    # M stream, amortizes ~0.35us/grid-step); otherwise a single 16-aligned
    # grid step -- splitting small batches buys nothing on the serial grid.
    if n > tile_n:
        tile = _round_up(tile_n, 256)
    else:
        tile = _round_up(max(n, 16), 16)
    n_total = _round_up(n, tile)
    if n_total != n:
        x2d = jnp.pad(x2d, ((0, n_total - n), (0, 0)))
    grid = (n_total // tile,)

    full = lambda shape: pl.BlockSpec(shape, lambda i: (0,) * len(shape))
    # NOTE: the grid-invariant weight blocks could use pipeline_mode=pl.Buffered(1)
    # to drop their second buffer (~0.8 MiB at hid=512); left at the default since
    # VMEM is not the binding constraint at these shapes.

    out = pl.pallas_call(
        functools.partial(_rgb_mlp_kernel, out_dim=out_dim,
                          bf16_elementwise=bf16_elementwise),
        out_shape=jax.ShapeDtypeStruct((n_total, out_dim), jnp.float32),
        grid_spec=pltpu.PrefetchScalarGridSpec(
            num_scalar_prefetch=0,
            grid=grid,
            in_specs=[
                pl.BlockSpec((tile, in_dim), lambda i: (i, 0)),  # x row-tile (f32)
                full((in_dim, hid)),       # w1 (grid-invariant, bf16)
                full((1, hid)),            # b1
                full((hid, hid)),          # w2
                full((1, hid)),            # b2
                full((hid, out_lanes)),    # w3 padded to 128 lanes (bf16)
                full((1, out_lanes)),      # b3 padded (f32)
            ],
            out_specs=pl.BlockSpec((tile, out_dim), lambda i: (i, 0)),
        ),
        compiler_params=pltpu.CompilerParams(
            dimension_semantics=("parallel",),
            vmem_limit_bytes=32 * 1024 * 1024,   # v5e scoped default is only 16 MiB
        ),
    )(x2d, w1, b1, w2, b2, w3, b3)

    out = out[:n].astype(x.dtype)     # drop row padding only; lanes already exact
    return out.reshape(*lead_shape, out_dim)


def init_params(key, input_dim, hidden_dim=512):
    """Deterministic init mirroring nn.Linear shapes (stored as [in, out])."""
    ks = jax.random.split(key, 6)

    def lin(kw, kb, fan_in, fan_out):
        bound = 1.0 / jnp.sqrt(fan_in)
        w = jax.random.uniform(kw, (fan_in, fan_out), jnp.float32, -bound, bound)
        b = jax.random.uniform(kb, (fan_out,), jnp.float32, -bound, bound)
        return w, b

    w1, b1 = lin(ks[0], ks[1], input_dim, hidden_dim)
    w2, b2 = lin(ks[2], ks[3], hidden_dim, hidden_dim)
    w3, b3 = lin(ks[4], ks[5], hidden_dim, 3)
    return (w1, b1, w2, b2, w3, b3)


if __name__ == "__main__":
    key = jax.random.PRNGKey(0)
    k_x, k_p = jax.random.split(key)

    input_dim, hidden_dim = 32, 64
    # x: [batch=2, seq=64, input_dim=32] -> 128 rows -> single grid step, tile=128
    x = jax.random.normal(k_x, (2, 64, input_dim), dtype=jnp.float32)
    params = init_params(k_p, input_dim, hidden_dim)
    prepared = prepare_params(params)       # one-time weight prep (bf16 + padding)

    out = rgb_mlp(x, prepared)
    jax.block_until_ready(out)

    # Pure-JAX f32 reference; kernel uses bf16 operands with f32 accumulation,
    # so compare with a bf16-appropriate tolerance.
    w1, b1, w2, b2, w3, b3 = params
    ref = jnp.maximum(x @ w1 + b1, 0.0)
    ref = jnp.maximum(ref @ w2 + b2, 0.0)
    ref = ref @ w3 + b3
    assert out.shape == (2, 64, 3)
    max_err = float(jnp.max(jnp.abs(out - ref)))
    assert jnp.allclose(out, ref, atol=5e-2, rtol=5e-2), max_err

    print("KERNEL_OK")
</pallas_src>

<mosaic_0001>
module attributes {stable_mosaic.version = 11 : i64} {
  func.func @_rgb_mlp_kernel(%arg0: i32, %arg1: memref<128x32xf32, #tpu.memory_space<vmem>>, %arg2: memref<32x64xbf16, #tpu.memory_space<vmem>>, %arg3: memref<1x64xbf16, #tpu.memory_space<vmem>>, %arg4: memref<64x64xbf16, #tpu.memory_space<vmem>>, %arg5: memref<1x64xbf16, #tpu.memory_space<vmem>>, %arg6: memref<64x128xbf16, #tpu.memory_space<vmem>>, %arg7: memref<1x128xf32, #tpu.memory_space<vmem>>, %arg8: memref<128x3xf32, #tpu.memory_space<vmem>>) attributes {dimension_semantics = [#tpu.dimension_semantics<parallel>], iteration_bounds = array<i64: 1>, scalar_prefetch = 0 : i64, scratch_operands = 0 : i64, tpu.core_type = #tpu.core_type<tc>, window_params = [{transform_indices = @transform_0, window_bounds = array<i64: 128, 32>}, {pipeline_mode = #tpu.pipeline_mode<synchronous>, transform_indices = @transform_1, window_bounds = array<i64: 32, 64>}, {pipeline_mode = #tpu.pipeline_mode<synchronous>, transform_indices = @transform_2, window_bounds = array<i64: 1, 64>}, {pipeline_mode = #tpu.pipeline_mode<synchronous>, transform_indices = @transform_3, window_bounds = array<i64: 64, 64>}, {pipeline_mode = #tpu.pipeline_mode<synchronous>, transform_indices = @transform_4, window_bounds = array<i64: 1, 64>}, {pipeline_mode = #tpu.pipeline_mode<synchronous>, transform_indices = @transform_5, window_bounds = array<i64: 64, 128>}, {pipeline_mode = #tpu.pipeline_mode<synchronous>, transform_indices = @transform_6, window_bounds = array<i64: 1, 128>}, {transform_indices = @transform_7, window_bounds = array<i64: 128, 3>}]} {
    %c0 = arith.constant 0 : index
    %c0_0 = arith.constant 0 : index
    %0 = vector.load %arg1[%c0, %c0_0] : memref<128x32xf32, #tpu.memory_space<vmem>>, vector<128x32xf32>
    %1 = arith.truncf %0 : vector<128x32xf32> to vector<128x32xbf16>
    %c0_1 = arith.constant 0 : index
    %c0_2 = arith.constant 0 : index
    %2 = vector.load %arg2[%c0_1, %c0_2] : memref<32x64xbf16, #tpu.memory_space<vmem>>, vector<32x64xbf16>
    %cst = arith.constant dense<0.000000e+00> : vector<128x64xf32>
    %3 = tpu.matmul %1, %2, %cst {dimension_numbers = #tpu.dot_dimension_numbers<[1], [0], [0], [1], [0, 0, 1, 1], [], []>} : vector<128x32xbf16>, vector<32x64xbf16>, vector<128x64xf32> -> vector<128x64xf32>
    %4 = arith.truncf %3 : vector<128x64xf32> to vector<128x64xbf16>
    %c0_3 = arith.constant 0 : index
    %c0_4 = arith.constant 0 : index
    %5 = vector.load %arg3[%c0_3, %c0_4] : memref<1x64xbf16, #tpu.memory_space<vmem>>, vector<1x64xbf16>
    %6 = vector.broadcast %5 : vector<1x64xbf16> to vector<128x64xbf16>
    %7 = arith.addf %4, %6 : vector<128x64xbf16>
    %cst_5 = arith.constant 0.000000e+00 : bf16
    %8 = vector.broadcast %cst_5 : bf16 to vector<128x64xbf16>
    %9 = arith.maximumf %7, %8 : vector<128x64xbf16>
    %c0_6 = arith.constant 0 : index
    %c0_7 = arith.constant 0 : index
    %10 = vector.load %arg4[%c0_6, %c0_7] : memref<64x64xbf16, #tpu.memory_space<vmem>>, vector<64x64xbf16>
    %cst_8 = arith.constant dense<0.000000e+00> : vector<128x64xf32>
    %11 = tpu.matmul %9, %10, %cst_8 {dimension_numbers = #tpu.dot_dimension_numbers<[1], [0], [0], [1], [0, 0, 1, 1], [], []>} : vector<128x64xbf16>, vector<64x64xbf16>, vector<128x64xf32> -> vector<128x64xf32>
    %12 = arith.truncf %11 : vector<128x64xf32> to vector<128x64xbf16>
    %c0_9 = arith.constant 0 : index
    %c0_10 = arith.constant 0 : index
    %13 = vector.load %arg5[%c0_9, %c0_10] : memref<1x64xbf16, #tpu.memory_space<vmem>>, vector<1x64xbf16>
    %14 = vector.broadcast %13 : vector<1x64xbf16> to vector<128x64xbf16>
    %15 = arith.addf %12, %14 : vector<128x64xbf16>
    %cst_11 = arith.constant 0.000000e+00 : bf16
    %16 = vector.broadcast %cst_11 : bf16 to vector<128x64xbf16>
    %17 = arith.maximumf %15, %16 : vector<128x64xbf16>
    %c0_12 = arith.constant 0 : index
    %c0_13 = arith.constant 0 : index
    %18 = vector.load %arg6[%c0_12, %c0_13] : memref<64x128xbf16, #tpu.memory_space<vmem>>, vector<64x128xbf16>
    %cst_14 = arith.constant dense<0.000000e+00> : vector<128x128xf32>
    %19 = tpu.matmul %17, %18, %cst_14 {dimension_numbers = #tpu.dot_dimension_numbers<[1], [0], [0], [1], [0, 0, 1, 1], [], []>} : vector<128x64xbf16>, vector<64x128xbf16>, vector<128x128xf32> -> vector<128x128xf32>
    %c0_15 = arith.constant 0 : index
    %c0_16 = arith.constant 0 : index
    %20 = vector.load %arg7[%c0_15, %c0_16] : memref<1x128xf32, #tpu.memory_space<vmem>>, vector<1x128xf32>
    %21 = vector.broadcast %20 : vector<1x128xf32> to vector<128x128xf32>
    %22 = arith.addf %19, %21 : vector<128x128xf32>
    %23 = vector.extract_strided_slice %22 {offsets = [0, 0], sizes = [128, 3], strides = [1, 1]} : vector<128x128xf32> to vector<128x3xf32>
    %c0_17 = arith.constant 0 : index
    %c0_18 = arith.constant 0 : index
    %24 = vector.load %arg8[%c0_17, %c0_18] : memref<128x3xf32, #tpu.memory_space<vmem>>, vector<128x3xf32>
    tpu.vector_store %arg8[%c0_17, %c0_18], %23 {strides = array<i32>} : memref<128x3xf32, #tpu.memory_space<vmem>>, vector<128x3xf32>,
    return
  }
  func.func @transform_0(%arg0: i32) -> (i32, i32) {
    %c0_i32 = arith.constant 0 : i32
    %c0_i32_0 = arith.constant 0 : i32
    return %arg0, %c0_i32 : i32, i32
  }
  func.func @transform_1(%arg0: i32) -> (i32, i32) {
    %c0_i32 = arith.constant 0 : i32
    %c0_i32_0 = arith.constant 0 : i32
    %c0_i32_1 = arith.constant 0 : i32
    return %c0_i32, %c0_i32_0 : i32, i32
  }
  func.func @transform_2(%arg0: i32) -> (i32, i32) {
    %c0_i32 = arith.constant 0 : i32
    %c0_i32_0 = arith.constant 0 : i32
    %c0_i32_1 = arith.constant 0 : i32
    return %c0_i32, %c0_i32_0 : i32, i32
  }
  func.func @transform_3(%arg0: i32) -> (i32, i32) {
    %c0_i32 = arith.constant 0 : i32
    %c0_i32_0 = arith.constant 0 : i32
    %c0_i32_1 = arith.constant 0 : i32
    return %c0_i32, %c0_i32_0 : i32, i32
  }
  func.func @transform_4(%arg0: i32) -> (i32, i32) {
    %c0_i32 = arith.constant 0 : i32
    %c0_i32_0 = arith.constant 0 : i32
    %c0_i32_1 = arith.constant 0 : i32
    return %c0_i32, %c0_i32_0 : i32, i32
  }
  func.func @transform_5(%arg0: i32) -> (i32, i32) {
    %c0_i32 = arith.constant 0 : i32
    %c0_i32_0 = arith.constant 0 : i32
    %c0_i32_1 = arith.constant 0 : i32
    return %c0_i32, %c0_i32_0 : i32, i32
  }
  func.func @transform_6(%arg0: i32) -> (i32, i32) {
    %c0_i32 = arith.constant 0 : i32
    %c0_i32_0 = arith.constant 0 : i32
    %c0_i32_1 = arith.constant 0 : i32
    return %c0_i32, %c0_i32_0 : i32, i32
  }
  func.func @transform_7(%arg0: i32) -> (i32, i32) {
    %c0_i32 = arith.constant 0 : i32
    %c0_i32_0 = arith.constant 0 : i32
    return %arg0, %c0_i32 : i32, i32
  }
}

</mosaic_0001>

<llo_original>
// kernel: rgb_mlp.1
$region0: #{rgb_mlp.1}
  #allocation0 [shape = 'u32[]', space=smem, size = 0x4, offset = 0x4, fixed_abs, tag = 'smem constant byte address 0x4 - core index']
  #allocation1 [shape = 'u32[144,128]{1,0:T(1,128)}', space=vmem, size = 0x12000, scoped, tag = 'internal scratch']
  %s0 = inlined_call_operand.vmem [shape: f32[128,32], index: 0, kind: input, shape index: {}]
  %s1 = inlined_call_operand.vmem [shape: bf16[32,64], index: 1, kind: input, shape index: {}]
  %s2 = inlined_call_operand.vmem [shape: bf16[1,64], index: 2, kind: input, shape index: {}]
  %s3 = inlined_call_operand.vmem [shape: bf16[64,64], index: 3, kind: input, shape index: {}]
  %s4 = inlined_call_operand.vmem [shape: bf16[1,64], index: 4, kind: input, shape index: {}]
  %s5 = inlined_call_operand.vmem [shape: bf16[64,128], index: 5, kind: input, shape index: {}]
  %s6 = inlined_call_operand.vmem [shape: f32[1,128], index: 6, kind: input, shape index: {}]
  %s7 = inlined_call_operand.vmem [shape: f32[128,3], index: 7, kind: output, shape index: {}]
  %s8 = sld [smem:[#allocation0]]
  $region38: #{rgb_mlp.1} parent=0
    _
  %s10 = ssub.s32 1, %s8
  %s11 = scalar_select 0, %s10, %s8
  // Predicated region
  $region2: #{rgb_mlp.1} parent=0 // pred_check
    _
  $region3: #{rgb_mlp.1} parent=0 // pred_check_branch
    %13 = sbr.rel (0) target = $region5
  $region4: #{rgb_mlp.1} parent=0 // pred_region
    _
  $region5: #{rgb_mlp.1} parent=0 // pred_fallthru
    _
  // Predicated region
  $region6: #{rgb_mlp.1} parent=0 // pred_check
    _
  $region7: #{rgb_mlp.1} parent=0 // pred_check_branch
    %15 = sbr.rel (0) target = $region9
  $region8: #{rgb_mlp.1} parent=0 // pred_region
    _
  $region9: #{rgb_mlp.1} parent=0 // pred_fallthru
    _
  // Predicated region
  $region10: #{rgb_mlp.1} parent=0 // pred_check
    _
  $region11: #{rgb_mlp.1} parent=0 // pred_check_branch
    %17 = sbr.rel (0) target = $region13
  $region12: #{rgb_mlp.1} parent=0 // pred_region
    _
  $region13: #{rgb_mlp.1} parent=0 // pred_fallthru
    _
  // Predicated region
  $region14: #{rgb_mlp.1} parent=0 // pred_check
    _
  $region15: #{rgb_mlp.1} parent=0 // pred_check_branch
    %19 = sbr.rel (0) target = $region17
  $region16: #{rgb_mlp.1} parent=0 // pred_region
    _
  $region17: #{rgb_mlp.1} parent=0 // pred_fallthru
    _
  // Predicated region
  $region18: #{rgb_mlp.1} parent=0 // pred_check
    _
  $region19: #{rgb_mlp.1} parent=0 // pred_check_branch
    %21 = sbr.rel (0) target = $region21
  $region20: #{rgb_mlp.1} parent=0 // pred_region
    _
  $region21: #{rgb_mlp.1} parent=0 // pred_fallthru
    _
  // Predicated region
  $region22: #{rgb_mlp.1} parent=0 // pred_check
    _
  $region23: #{rgb_mlp.1} parent=0 // pred_check_branch
    %23 = sbr.rel (0) target = $region25
  $region24: #{rgb_mlp.1} parent=0 // pred_region
    _
  $region25: #{rgb_mlp.1} parent=0 // pred_fallthru
    _
  // Predicated region
  $region26: #{rgb_mlp.1} parent=0 // pred_check
    _
  $region27: #{rgb_mlp.1} parent=0 // pred_check_branch
    %25 = sbr.rel (0) target = $region29
  $region28: #{rgb_mlp.1} parent=0 // pred_region
    _
  $region29: #{rgb_mlp.1} parent=0 // pred_fallthru
    _
  %v27 = vld [vmem:[%s0] sm:$0xff]
  %v28 = vld [vmem:[%s0 + $0x8] sm:$0xff]
  %v29 = vld [vmem:[%s0 + $0x10] sm:$0xff]
  %v30 = vld [vmem:[%s0 + $0x18] sm:$0xff]
  %v31 = vld [vmem:[%s0 + $0x20] sm:$0xff]
  %v32 = vld [vmem:[%s0 + $0x28] sm:$0xff]
  %v33 = vld [vmem:[%s0 + $0x30] sm:$0xff]
  %v34 = vld [vmem:[%s0 + $0x38] sm:$0xff]
  %v35 = vld [vmem:[%s0 + $0x40] sm:$0xff]
  %v36 = vld [vmem:[%s0 + $0x48] sm:$0xff]
  %v37 = vld [vmem:[%s0 + $0x50] sm:$0xff]
  %v38 = vld [vmem:[%s0 + $0x58] sm:$0xff]
  %v39 = vld [vmem:[%s0 + $0x60] sm:$0xff]
  %v40 = vld [vmem:[%s0 + $0x68] sm:$0xff]
  %v41 = vld [vmem:[%s0 + $0x70] sm:$0xff]
  %v42 = vld [vmem:[%s0 + $0x78] sm:$0xff]
  %v43 = vpack.c.bf16 %v28, %v27
  %v44 = vpack.c.bf16 %v30, %v29
  %v45 = vpack.c.bf16 %v32, %v31
  %v46 = vpack.c.bf16 %v34, %v33
  %v47 = vpack.c.bf16 %v36, %v35
  %v48 = vpack.c.bf16 %v38, %v37
  %v49 = vpack.c.bf16 %v40, %v39
  %v50 = vpack.c.bf16 %v42, %v41
  %v51 = vld [vmem:[%s1] sm:$0xf]
  %v52 = vld [vmem:[%s1 + $0x4] sm:$0xf]
  %v53 = vld [vmem:[%s1 + $0x8] sm:$0xf]
  %v54 = vld [vmem:[%s1 + $0xc] sm:$0xf]
  %v59 = vunpack.c.l.b16 %v51
  %v60 = vunpack.c.l.b16 %v52
  %v61 = vunpack.c.l.b16 %v53
  %v62 = vunpack.c.l.b16 %v54
  %v63 = vpack.c.b16 %v60, %v59
  %v64 = vpack.c.b16 %v62, %v61
  %vm67 = vcmask 261120
  %v69 = vsel %vm67, %v43, 0
  %v72 = vsel %vm67, %v44, 0
  %v75 = vsel %vm67, %v45, 0
  %v78 = vsel %vm67, %v46, 0
  %v81 = vsel %vm67, %v47, 0
  %v84 = vsel %vm67, %v48, 0
  %v87 = vsel %vm67, %v49, 0
  %v90 = vsel %vm67, %v50, 0
  %92 = vmatprep.subr.bf16.mxu0 0
  %93 = vmatpush1.bf16.msra.mxu0 0
  %94 = vmatprep.subr.bf16.mxu0 0
  %95 = vmatpush1.bf16.msra.mxu0 0
  %96 = vmatprep.subr.bf16.mxu0 0
  %97 = vmatpush1.bf16.msra.mxu0 0
  %98 = vmatprep.subr.bf16.mxu0 0
  %99 = vmatpush1.bf16.msra.mxu0 0
  %100 = vmatprep.subr.bf16.mxu0 0
  %101 = vmatpush1.bf16.msra.mxu0 0
  %102 = vmatprep.subr.bf16.mxu0 0
  %103 = vmatpush1.bf16.msra.mxu0 0
  %104 = vmatprep.subr.bf16.mxu0 0
  %105 = vmatpush1.bf16.msra.mxu0 %v64
  %106 = vmatprep.subr.bf16.mxu0 0
  %107 = vmatpush1.bf16.msra.mxu0 %v63
  %108 = vmatprep.subr.bf16.mxu0 0
  %109 = vmatpush2.bf16.msra.mxu0 0
  %110 = vmatprep.subr.bf16.mxu0 0
  %111 = vmatpush2.bf16.msra.mxu0 0
  %112 = vmatprep.subr.bf16.mxu0 0
  %113 = vmatpush2.bf16.msra.mxu0 0
  %114 = vmatprep.subr.bf16.mxu0 0
  %115 = vmatpush2.bf16.msra.mxu0 0
  %116 = vmatprep.subr.bf16.mxu0 0
  %117 = vmatpush2.bf16.msra.mxu0 0
  %118 = vmatprep.subr.bf16.mxu0 0
  %119 = vmatpush2.bf16.msra.mxu0 0
  %120 = vmatprep.subr.bf16.mxu0 0
  %121 = vmatpush2.bf16.msra.mxu0 0
  %122 = vmatprep.subr.bf16.mxu0 0
  %123 = vmatpush2.bf16.msra.mxu0 0
  %124 = vmatprep.mubr.bf16.mxu0 0
  %125 = vmatmul.mubr.bf16.gmra.mxu0 %v69
  %v126 = vpop.f32.mrf.mxu0
  %v127 = vadd.f32 0.0, %v126
  %v128 = vpop.f32.mrf.mxu0
  %v129 = vpop.f32.mrf.mxu0
  %v130 = vadd.f32 0.0, %v129
  %v131 = vpop.f32.mrf.mxu0
  %132 = vmatprep.mubr.bf16.mxu0 0
  %133 = vmatmul.mubr.bf16.gmra.mxu0 %v72
  %v134 = vpop.f32.mrf.mxu0
  %v135 = vadd.f32 0.0, %v134
  %v136 = vpop.f32.mrf.mxu0
  %v137 = vpop.f32.mrf.mxu0
  %v138 = vadd.f32 0.0, %v137
  %v139 = vpop.f32.mrf.mxu0
  %140 = vmatprep.mubr.bf16.mxu0 0
  %141 = vmatmul.mubr.bf16.gmra.mxu0 %v75
  %v142 = vpop.f32.mrf.mxu0
  %v143 = vadd.f32 0.0, %v142
  %v144 = vpop.f32.mrf.mxu0
  %v145 = vpop.f32.mrf.mxu0
  %v146 = vadd.f32 0.0, %v145
  %v147 = vpop.f32.mrf.mxu0
  %148 = vmatprep.mubr.bf16.mxu0 0
  %149 = vmatmul.mubr.bf16.gmra.mxu0 %v78
  %v150 = vpop.f32.mrf.mxu0
  %v151 = vadd.f32 0.0, %v150
  %v152 = vpop.f32.mrf.mxu0
  %v153 = vpop.f32.mrf.mxu0
  %v154 = vadd.f32 0.0, %v153
  %v155 = vpop.f32.mrf.mxu0
  %156 = vmatprep.mubr.bf16.mxu0 0
  %157 = vmatmul.mubr.bf16.gmra.mxu0 %v81
  %v158 = vpop.f32.mrf.mxu0
  %v159 = vadd.f32 0.0, %v158
  %v160 = vpop.f32.mrf.mxu0
  %v161 = vpop.f32.mrf.mxu0
  %v162 = vadd.f32 0.0, %v161
  %v163 = vpop.f32.mrf.mxu0
  %164 = vmatprep.mubr.bf16.mxu0 0
  %165 = vmatmul.mubr.bf16.gmra.mxu0 %v84
  %v166 = vpop.f32.mrf.mxu0
  %v167 = vadd.f32 0.0, %v166
  %v168 = vpop.f32.mrf.mxu0
  %v169 = vpop.f32.mrf.mxu0
  %v170 = vadd.f32 0.0, %v169
  %v171 = vpop.f32.mrf.mxu0
  %172 = vmatprep.mubr.bf16.mxu0 0
  %173 = vmatmul.mubr.bf16.gmra.mxu0 %v87
  %v174 = vpop.f32.mrf.mxu0
  %v175 = vadd.f32 0.0, %v174
  %v176 = vpop.f32.mrf.mxu0
  %v177 = vpop.f32.mrf.mxu0
  %v178 = vadd.f32 0.0, %v177
  %v179 = vpop.f32.mrf.mxu0
  %180 = vmatprep.mubr.bf16.mxu0 0
  %181 = vmatmul.mubr.bf16.gmra.mxu0 %v90
  %v182 = vpop.f32.mrf.mxu0
  %v183 = vadd.f32 0.0, %v182
  %v184 = vpop.f32.mrf.mxu0
  %v185 = vpop.f32.mrf.mxu0
  %v186 = vadd.f32 0.0, %v185
  %v187 = vpop.f32.mrf.mxu0
  %188 = vdwg.mxu0
  %v189 = vpack.c.bf16 %v130, %v127
  %v190 = vpack.c.bf16 %v138, %v135
  %v191 = vpack.c.bf16 %v146, %v143
  %v192 = vpack.c.bf16 %v154, %v151
  %v193 = vpack.c.bf16 %v162, %v159
  %v194 = vpack.c.bf16 %v170, %v167
  %v195 = vpack.c.bf16 %v178, %v175
  %v196 = vpack.c.bf16 %v186, %v183
  %v197 = vld [vmem:[%s2] sm:$0x1]
  %v199 = vpack.i.b16 %v197, %v197
  %v201 = vlaneseq
  %v202 = vshrl.u32 %v201, 7
  %v203 = vsub.s32 0, %v202
  %v204 = vrot.slane %v199, %v203
  %v205 = vadd.bf16 %v189, %v204
  %v206 = vadd.bf16 %v190, %v204
  %v207 = vadd.bf16 %v191, %v204
  %v208 = vadd.bf16 %v192, %v204
  %v209 = vadd.bf16 %v193, %v204
  %v210 = vadd.bf16 %v194, %v204
  %v211 = vadd.bf16 %v195, %v204
  %v212 = vadd.bf16 %v196, %v204
  %v213 = vmax.bf16 %v205, 0
  %v214 = vmax.bf16 %v206, 0
  %v215 = vmax.bf16 %v207, 0
  %v216 = vmax.bf16 %v208, 0
  %v217 = vmax.bf16 %v209, 0
  %v218 = vmax.bf16 %v210, 0
  %v219 = vmax.bf16 %v211, 0
  %v220 = vmax.bf16 %v212, 0
  %v221 = vld [vmem:[%s3] sm:$0xf]
  %v222 = vld [vmem:[%s3 + $0x4] sm:$0xf]
  %v223 = vld [vmem:[%s3 + $0x8] sm:$0xf]
  %v224 = vld [vmem:[%s3 + $0xc] sm:$0xf]
  %v225 = vld [vmem:[%s3 + $0x10] sm:$0xf]
  %v226 = vld [vmem:[%s3 + $0x14] sm:$0xf]
  %v227 = vld [vmem:[%s3 + $0x18] sm:$0xf]
  %v228 = vld [vmem:[%s3 + $0x1c] sm:$0xf]
  %v237 = vunpack.c.l.b16 %v221
  %v238 = vunpack.c.l.b16 %v222
  %v239 = vunpack.c.l.b16 %v223
  %v240 = vunpack.c.l.b16 %v224
  %v241 = vunpack.c.l.b16 %v225
  %v242 = vunpack.c.l.b16 %v226
  %v243 = vunpack.c.l.b16 %v227
  %v244 = vunpack.c.l.b16 %v228
  %v245 = vpack.c.b16 %v238, %v237
  %v246 = vpack.c.b16 %v240, %v239
  %v247 = vpack.c.b16 %v242, %v241
  %v248 = vpack.c.b16 %v244, %v243
  %vm253 = vcmask 523264
  %v255 = vsel %vm253, %v213, 0
  %v258 = vsel %vm253, %v214, 0
  %v261 = vsel %vm253, %v215, 0
  %v264 = vsel %vm253, %v216, 0
  %v267 = vsel %vm253, %v217, 0
  %v270 = vsel %vm253, %v218, 0
  %v273 = vsel %vm253, %v219, 0
  %v276 = vsel %vm253, %v220, 0
  %278 = vmatprep.subr.bf16.mxu0 0
  %279 = vmatpush1.bf16.msra.mxu0 0
  %280 = vmatprep.subr.bf16.mxu0 0
  %281 = vmatpush1.bf16.msra.mxu0 0
  %282 = vmatprep.subr.bf16.mxu0 0
  %283 = vmatpush1.bf16.msra.mxu0 0
  %284 = vmatprep.subr.bf16.mxu0 0
  %285 = vmatpush1.bf16.msra.mxu0 0
  %286 = vmatprep.subr.bf16.mxu0 0
  %287 = vmatpush1.bf16.msra.mxu0 %v248
  %288 = vmatprep.subr.bf16.mxu0 0
  %289 = vmatpush1.bf16.msra.mxu0 %v247
  %290 = vmatprep.subr.bf16.mxu0 0
  %291 = vmatpush1.bf16.msra.mxu0 %v246
  %292 = vmatprep.subr.bf16.mxu0 0
  %293 = vmatpush1.bf16.msra.mxu0 %v245
  %294 = vmatprep.subr.bf16.mxu0 0
  %295 = vmatpush2.bf16.msra.mxu0 0
  %296 = vmatprep.subr.bf16.mxu0 0
  %297 = vmatpush2.bf16.msra.mxu0 0
  %298 = vmatprep.subr.bf16.mxu0 0
  %299 = vmatpush2.bf16.msra.mxu0 0
  %300 = vmatprep.subr.bf16.mxu0 0
  %301 = vmatpush2.bf16.msra.mxu0 0
  %302 = vmatprep.subr.bf16.mxu0 0
  %303 = vmatpush2.bf16.msra.mxu0 0
  %304 = vmatprep.subr.bf16.mxu0 0
  %305 = vmatpush2.bf16.msra.mxu0 0
  %306 = vmatprep.subr.bf16.mxu0 0
  %307 = vmatpush2.bf16.msra.mxu0 0
  %308 = vmatprep.subr.bf16.mxu0 0
  %309 = vmatpush2.bf16.msra.mxu0 0
  %310 = vmatprep.mubr.bf16.mxu0 0
  %311 = vmatmul.mubr.bf16.gmra.mxu0 %v255
  %v312 = vpop.f32.mrf.mxu0
  %v313 = vadd.f32 0.0, %v312
  %v314 = vpop.f32.mrf.mxu0
  %v315 = vpop.f32.mrf.mxu0
  %v316 = vadd.f32 0.0, %v315
  %v317 = vpop.f32.mrf.mxu0
  %318 = vmatprep.mubr.bf16.mxu0 0
  %319 = vmatmul.mubr.bf16.gmra.mxu0 %v258
  %v320 = vpop.f32.mrf.mxu0
  %v321 = vadd.f32 0.0, %v320
  %v322 = vpop.f32.mrf.mxu0
  %v323 = vpop.f32.mrf.mxu0
  %v324 = vadd.f32 0.0, %v323
  %v325 = vpop.f32.mrf.mxu0
  %326 = vmatprep.mubr.bf16.mxu0 0
  %327 = vmatmul.mubr.bf16.gmra.mxu0 %v261
  %v328 = vpop.f32.mrf.mxu0
  %v329 = vadd.f32 0.0, %v328
  %v330 = vpop.f32.mrf.mxu0
  %v331 = vpop.f32.mrf.mxu0
  %v332 = vadd.f32 0.0, %v331
  %v333 = vpop.f32.mrf.mxu0
  %334 = vmatprep.mubr.bf16.mxu0 0
  %335 = vmatmul.mubr.bf16.gmra.mxu0 %v264
  %v336 = vpop.f32.mrf.mxu0
  %v337 = vadd.f32 0.0, %v336
  %v338 = vpop.f32.mrf.mxu0
  %v339 = vpop.f32.mrf.mxu0
  %v340 = vadd.f32 0.0, %v339
  %v341 = vpop.f32.mrf.mxu0
  %342 = vmatprep.mubr.bf16.mxu0 0
  %343 = vmatmul.mubr.bf16.gmra.mxu0 %v267
  %v344 = vpop.f32.mrf.mxu0
  %v345 = vadd.f32 0.0, %v344
  %v346 = vpop.f32.mrf.mxu0
  %v347 = vpop.f32.mrf.mxu0
  %v348 = vadd.f32 0.0, %v347
  %v349 = vpop.f32.mrf.mxu0
  %350 = vmatprep.mubr.bf16.mxu0 0
  %351 = vmatmul.mubr.bf16.gmra.mxu0 %v270
  %v352 = vpop.f32.mrf.mxu0
  %v353 = vadd.f32 0.0, %v352
  %v354 = vpop.f32.mrf.mxu0
  %v355 = vpop.f32.mrf.mxu0
  %v356 = vadd.f32 0.0, %v355
  %v357 = vpop.f32.mrf.mxu0
  %358 = vmatprep.mubr.bf16.mxu0 0
  %359 = vmatmul.mubr.bf16.gmra.mxu0 %v273
  %v360 = vpop.f32.mrf.mxu0
  %v361 = vadd.f32 0.0, %v360
  %v362 = vpop.f32.mrf.mxu0
  %v363 = vpop.f32.mrf.mxu0
  %v364 = vadd.f32 0.0, %v363
  %v365 = vpop.f32.mrf.mxu0
  %366 = vmatprep.mubr.bf16.mxu0 0
  %367 = vmatmul.mubr.bf16.gmra.mxu0 %v276
  %v368 = vpop.f32.mrf.mxu0
  %v369 = vadd.f32 0.0, %v368
  %v370 = vpop.f32.mrf.mxu0
  %v371 = vpop.f32.mrf.mxu0
  %v372 = vadd.f32 0.0, %v371
  %v373 = vpop.f32.mrf.mxu0
  %374 = vdwg.mxu0
  %v375 = vpack.c.bf16 %v316, %v313
  %v376 = vpack.c.bf16 %v324, %v321
  %v377 = vpack.c.bf16 %v332, %v329
  %v378 = vpack.c.bf16 %v340, %v337
  %v379 = vpack.c.bf16 %v348, %v345
  %v380 = vpack.c.bf16 %v356, %v353
  %v381 = vpack.c.bf16 %v364, %v361
  %v382 = vpack.c.bf16 %v372, %v369
  %v383 = vld [vmem:[%s4] sm:$0x1]
  %v385 = vpack.i.b16 %v383, %v383
  %v387 = vlaneseq
  %v388 = vshrl.u32 %v387, 7
  %v389 = vsub.s32 0, %v388
  %v390 = vrot.slane %v385, %v389
  %v391 = vadd.bf16 %v375, %v390
  %v392 = vadd.bf16 %v376, %v390
  %v393 = vadd.bf16 %v377, %v390
  %v394 = vadd.bf16 %v378, %v390
  %v395 = vadd.bf16 %v379, %v390
  %v396 = vadd.bf16 %v380, %v390
  %v397 = vadd.bf16 %v381, %v390
  %v398 = vadd.bf16 %v382, %v390
  %v399 = vmax.bf16 %v391, 0
  %v400 = vmax.bf16 %v392, 0
  %v401 = vmax.bf16 %v393, 0
  %v402 = vmax.bf16 %v394, 0
  %v403 = vmax.bf16 %v395, 0
  %v404 = vmax.bf16 %v396, 0
  %v405 = vmax.bf16 %v397, 0
  %v406 = vmax.bf16 %v398, 0
  %v407 = vld [vmem:[%s5] sm:$0xf]
  %v408 = vld [vmem:[%s5 + $0x4] sm:$0xf]
  %v409 = vld [vmem:[%s5 + $0x8] sm:$0xf]
  %v410 = vld [vmem:[%s5 + $0xc] sm:$0xf]
  %v411 = vld [vmem:[%s5 + $0x10] sm:$0xf]
  %v412 = vld [vmem:[%s5 + $0x14] sm:$0xf]
  %v413 = vld [vmem:[%s5 + $0x18] sm:$0xf]
  %v414 = vld [vmem:[%s5 + $0x1c] sm:$0xf]
  %v415 = vld [vmem:[%s6] sm:$0x1]
  %v417 = vlaneseq
  %v418 = vshrl.u32 %v417, 7
  %v419 = vsub.s32 0, %v418
  %v420 = vrot.slane %v415, %v419
  %v430 = vunpack.c.l.b16 %v407
  %v431 = vunpack.c.l.b16 %v408
  %v432 = vunpack.c.l.b16 %v409
  %v433 = vunpack.c.l.b16 %v410
  %v434 = vunpack.c.l.b16 %v411
  %v435 = vunpack.c.l.b16 %v412
  %v436 = vunpack.c.l.b16 %v413
  %v437 = vunpack.c.l.b16 %v414
  %v438 = vpack.c.b16 %v431, %v430
  %v439 = vpack.c.b16 %v433, %v432
  %v440 = vpack.c.b16 %v435, %v434
  %v441 = vpack.c.b16 %v437, %v436
  %v447 = vsel %vm253, %v399, 0
  %v450 = vsel %vm253, %v400, 0
  %v453 = vsel %vm253, %v401, 0
  %v456 = vsel %vm253, %v402, 0
  %v459 = vsel %vm253, %v403, 0
  %v462 = vsel %vm253, %v404, 0
  %v465 = vsel %vm253, %v405, 0
  %v468 = vsel %vm253, %v406, 0
  %470 = vmatprep.subr.bf16.mxu0 0
  %471 = vmatpush1.bf16.msra.mxu0 0
  %472 = vmatprep.subr.bf16.mxu0 0
  %473 = vmatpush1.bf16.msra.mxu0 0
  %474 = vmatprep.subr.bf16.mxu0 0
  %475 = vmatpush1.bf16.msra.mxu0 0
  %476 = vmatprep.subr.bf16.mxu0 0
  %477 = vmatpush1.bf16.msra.mxu0 0
  %478 = vmatprep.subr.bf16.mxu0 0
  %479 = vmatpush1.bf16.msra.mxu0 %v441
  %480 = vmatprep.subr.bf16.mxu0 0
  %481 = vmatpush1.bf16.msra.mxu0 %v440
  %482 = vmatprep.subr.bf16.mxu0 0
  %483 = vmatpush1.bf16.msra.mxu0 %v439
  %484 = vmatprep.subr.bf16.mxu0 0
  %485 = vmatpush1.bf16.msra.mxu0 %v438
  %486 = vmatprep.subr.bf16.mxu0 0
  %487 = vmatpush2.bf16.msra.mxu0 0
  %488 = vmatprep.subr.bf16.mxu0 0
  %489 = vmatpush2.bf16.msra.mxu0 0
  %490 = vmatprep.subr.bf16.mxu0 0
  %491 = vmatpush2.bf16.msra.mxu0 0
  %492 = vmatprep.subr.bf16.mxu0 0
  %493 = vmatpush2.bf16.msra.mxu0 0
  %494 = vmatprep.subr.bf16.mxu0 0
  %495 = vmatpush2.bf16.msra.mxu0 0
  %496 = vmatprep.subr.bf16.mxu0 0
  %497 = vmatpush2.bf16.msra.mxu0 0
  %498 = vmatprep.subr.bf16.mxu0 0
  %499 = vmatpush2.bf16.msra.mxu0 0
  %500 = vmatprep.subr.bf16.mxu0 0
  %501 = vmatpush2.bf16.msra.mxu0 0
  %502 = vmatprep.mubr.bf16.mxu0 0
  %503 = vmatmul.mubr.bf16.gmra.mxu0 %v447
  %v504 = vpop.f32.mrf.mxu0
  %v505 = vadd.f32 %v420, %v504
  %v506 = vpop.f32.mrf.mxu0
  %v507 = vpop.f32.mrf.mxu0
  %v508 = vadd.f32 %v420, %v507
  %v509 = vpop.f32.mrf.mxu0
  %510 = vmatprep.mubr.bf16.mxu0 0
  %511 = vmatmul.mubr.bf16.gmra.mxu0 %v450
  %v512 = vpop.f32.mrf.mxu0
  %v513 = vadd.f32 %v420, %v512
  %v514 = vpop.f32.mrf.mxu0
  %v515 = vpop.f32.mrf.mxu0
  %v516 = vadd.f32 %v420, %v515
  %v517 = vpop.f32.mrf.mxu0
  %518 = vmatprep.mubr.bf16.mxu0 0
  %519 = vmatmul.mubr.bf16.gmra.mxu0 %v453
  %v520 = vpop.f32.mrf.mxu0
  %v521 = vadd.f32 %v420, %v520
  %v522 = vpop.f32.mrf.mxu0
  %v523 = vpop.f32.mrf.mxu0
  %v524 = vadd.f32 %v420, %v523
  %v525 = vpop.f32.mrf.mxu0
  %526 = vmatprep.mubr.bf16.mxu0 0
  %527 = vmatmul.mubr.bf16.gmra.mxu0 %v456
  %v528 = vpop.f32.mrf.mxu0
  %v529 = vadd.f32 %v420, %v528
  %v530 = vpop.f32.mrf.mxu0
  %v531 = vpop.f32.mrf.mxu0
  %v532 = vadd.f32 %v420, %v531
  %v533 = vpop.f32.mrf.mxu0
  %534 = vmatprep.mubr.bf16.mxu0 0
  %535 = vmatmul.mubr.bf16.gmra.mxu0 %v459
  %v536 = vpop.f32.mrf.mxu0
  %v537 = vadd.f32 %v420, %v536
  %v538 = vpop.f32.mrf.mxu0
  %v539 = vpop.f32.mrf.mxu0
  %v540 = vadd.f32 %v420, %v539
  %v541 = vpop.f32.mrf.mxu0
  %542 = vmatprep.mubr.bf16.mxu0 0
  %543 = vmatmul.mubr.bf16.gmra.mxu0 %v462
  %v544 = vpop.f32.mrf.mxu0
  %v545 = vadd.f32 %v420, %v544
  %v546 = vpop.f32.mrf.mxu0
  %v547 = vpop.f32.mrf.mxu0
  %v548 = vadd.f32 %v420, %v547
  %v549 = vpop.f32.mrf.mxu0
  %550 = vmatprep.mubr.bf16.mxu0 0
  %551 = vmatmul.mubr.bf16.gmra.mxu0 %v465
  %v552 = vpop.f32.mrf.mxu0
  %v553 = vadd.f32 %v420, %v552
  %v554 = vpop.f32.mrf.mxu0
  %v555 = vpop.f32.mrf.mxu0
  %v556 = vadd.f32 %v420, %v555
  %v557 = vpop.f32.mrf.mxu0
  %558 = vmatprep.mubr.bf16.mxu0 0
  %559 = vmatmul.mubr.bf16.gmra.mxu0 %v468
  %v560 = vpop.f32.mrf.mxu0
  %v561 = vadd.f32 %v420, %v560
  %v562 = vpop.f32.mrf.mxu0
  %v563 = vpop.f32.mrf.mxu0
  %v564 = vadd.f32 %v420, %v563
  %v565 = vpop.f32.mrf.mxu0
  %566 = vdwg.mxu0
  %vm567 = vcmask 23552
  %568 = vst.msk [vmem:[%s7] sm:$0xff] %vm567, %v505
  %569 = vst.msk [vmem:[%s7 + $0x8] sm:$0xff] %vm567, %v508
  %570 = vst.msk [vmem:[%s7 + $0x10] sm:$0xff] %vm567, %v513
  %571 = vst.msk [vmem:[%s7 + $0x18] sm:$0xff] %vm567, %v516
  %572 = vst.msk [vmem:[%s7 + $0x20] sm:$0xff] %vm567, %v521
  %573 = vst.msk [vmem:[%s7 + $0x28] sm:$0xff] %vm567, %v524
  %574 = vst.msk [vmem:[%s7 + $0x30] sm:$0xff] %vm567, %v529
  %575 = vst.msk [vmem:[%s7 + $0x38] sm:$0xff] %vm567, %v532
  %576 = vst.msk [vmem:[%s7 + $0x40] sm:$0xff] %vm567, %v537
  %577 = vst.msk [vmem:[%s7 + $0x48] sm:$0xff] %vm567, %v540
  %578 = vst.msk [vmem:[%s7 + $0x50] sm:$0xff] %vm567, %v545
  %579 = vst.msk [vmem:[%s7 + $0x58] sm:$0xff] %vm567, %v548
  %580 = vst.msk [vmem:[%s7 + $0x60] sm:$0xff] %vm567, %v553
  %581 = vst.msk [vmem:[%s7 + $0x68] sm:$0xff] %vm567, %v556
  %582 = vst.msk [vmem:[%s7 + $0x70] sm:$0xff] %vm567, %v561
  %583 = vst.msk [vmem:[%s7 + $0x78] sm:$0xff] %vm567, %v564
  // Predicated region
  $region30: #{rgb_mlp.1} parent=0 // pred_check
    _
  $region31: #{rgb_mlp.1} parent=0 // pred_check_branch
    %585 = sbr.rel (0) target = $region33
  $region32: #{rgb_mlp.1} parent=0 // pred_region
    _
  $region33: #{rgb_mlp.1} parent=0 // pred_fallthru
    _
  // Predicated region
  $region34: #{rgb_mlp.1} parent=0 // pred_check
    _
  $region35: #{rgb_mlp.1} parent=0 // pred_check_branch
    %587 = sbr.rel (0) target = $region37
  $region36: #{rgb_mlp.1} parent=0 // pred_region
    _
  $region37: #{rgb_mlp.1} parent=0 // pred_fallthru
    _

</llo_original>
